<compile_context>
chip_gen: v7x
topology: tpu7x:2x2x1
jax: 0.10.0
libtpu: 0.0.40
codegen_flags: <defaults>
</compile_context>

<pallas_src>
import math

import jax
import jax.numpy as jnp
from jax.experimental import pallas as pl
from jax.experimental.pallas import tpu as pltpu

_LANE = 128
_SUBLANE = 8
_MAX_PACKED_LANES = 4096      # cap on lane width when fusing small dims into one row


def _coremat_kernel(x_ref, w_ref, o_ref):
    # Elementwise multiply; the (1, block_lanes) weight broadcasts over sublanes.
    o_ref[...] = x_ref[...] * w_ref[...]


def _target_tile_bytes():
    """Per-generation x-tile target: bigger tiles on v7x to amortize step overhead."""
    try:
        kind = jax.devices()[0].device_kind.lower()
    except Exception:  # pragma: no cover - defensive
        kind = ""
    if "v7" in kind:
        return 6 * 1024 * 1024    # 3.2 TB/s HBM -> amortize ~0.35us/step; fits 64 MiB VMEM
    return 2 * 1024 * 1024        # v5e/v6e: 2 MiB is already ~85% of HBM roofline


def _plan_packing(batch, dim):
    """Fuse g logical rows into one lane-dense row.

    Returns (g, pad_rows): pack factor and how many rows to pad onto the batch
    so the reshape is exact.  Pure layout plumbing - the multiply is unchanged.
    """
    if dim % _LANE == 0:
        return 1, 0
    g0 = _LANE // math.gcd(dim, _LANE)       # smallest g with g*dim % 128 == 0
    pad = (-batch) % g0                      # < g0 <= 128 rows; rare path, see review
    padded = batch + pad
    g = g0
    while padded % (g * 2) == 0 and (g * 2) * dim <= _MAX_PACKED_LANES:
        g *= 2
    return g, pad


def _choose_tiling(rows, lanes, itemsize, target_tile_bytes):
    """Pick (block_rows, block_lanes) for a 2-D grid over a (rows, lanes) array."""
    # Dtype-aware sublane alignment: 8 rows/vreg for 32-bit, 16 for bf16, 32 for int8.
    row_align = _SUBLANE * max(1, 4 // max(itemsize, 1))

    # Lane axis: tile it (multiple of 128) only if one row-aligned strip already
    # exceeds the tile budget; otherwise keep the full lane width per block.
    if lanes % _LANE == 0 and row_align * lanes * itemsize > target_tile_bytes:
        block_lanes = (target_tile_bytes // (row_align * itemsize)) // _LANE * _LANE
        block_lanes = max(_LANE, min(block_lanes, lanes))
    else:
        block_lanes = lanes

    # Row axis: fill the tile budget, rounded to the packed sublane multiple.
    row_bytes = block_lanes * itemsize
    target_rows = max(row_align, target_tile_bytes // max(row_bytes, 1))
    target_rows = (target_rows // row_align) * row_align
    block_rows = rows if target_rows >= rows else target_rows

    # Guarantee a multi-step grid when possible so the pipeline double-buffers
    # (and v7x can shard the "parallel" axes over its two TensorCores).
    n_steps = pl.cdiv(rows, block_rows) * pl.cdiv(lanes, block_lanes)
    if n_steps < 2 and rows >= 2 * row_align:
        block_rows = max(row_align, (rows // 2) // row_align * row_align)

    return block_rows, block_lanes


def coremat_forward(x, weight):
    """y = x * weight with weight shape (1, dim) and x shape (..., dim)."""
    orig_shape = x.shape
    dim = orig_shape[-1]
    assert weight.shape == (1, dim), f"weight must be (1, {dim})"

    # Match PyTorch type promotion (torch.mul promotes to the wider dtype).
    out_dtype = jnp.result_type(x.dtype, weight.dtype)
    xw = x.astype(out_dtype)
    w = weight.astype(out_dtype)

    batch = math.prod(orig_shape[:-1]) if orig_shape[:-1] else 1
    x2 = xw.reshape(batch, dim)

    # --- lane-dense repacking (layout only) ---
    g, pad = _plan_packing(batch, dim)
    if pad:
        # Rare path (dim % 128 != 0 AND batch % g0 != 0): a < 128-row pad buys
        # full-width (unmasked) vector stores inside the kernel.
        x2 = jnp.pad(x2, ((0, pad), (0, 0)))
    rows = (batch + pad) // g
    lanes = g * dim
    xp = x2.reshape(rows, lanes)
    wp = jnp.tile(w, (1, g)) if g > 1 else w      # (1, lanes)

    itemsize = jnp.dtype(out_dtype).itemsize
    block_rows, block_lanes = _choose_tiling(rows, lanes, itemsize, _target_tile_bytes())

    n_row = pl.cdiv(rows, block_rows)
    n_lane = pl.cdiv(lanes, block_lanes)

    # VMEM limit from the real footprint (2x double-buffered in + out tiles plus
    # the weight row), with headroom; don't over-reserve on v5e's 16 MiB default.
    tile_bytes = block_rows * block_lanes * itemsize
    footprint = 4 * tile_bytes + 2 * block_lanes * itemsize
    vmem_limit = int(min(max(footprint + (8 << 20), 16 << 20), 48 << 20))

    yp = pl.pallas_call(
        _coremat_kernel,
        out_shape=jax.ShapeDtypeStruct((rows, lanes), out_dtype),
        grid=(n_row, n_lane),
        in_specs=[
            pl.BlockSpec((block_rows, block_lanes), lambda i, j: (i, j)),
            pl.BlockSpec((1, block_lanes), lambda i, j: (0, j)),   # tiny, re-fetched per lane block
        ],
        out_specs=pl.BlockSpec((block_rows, block_lanes), lambda i, j: (i, j)),
        compiler_params=pltpu.CompilerParams(
            dimension_semantics=("parallel", "parallel"),   # independent blocks; v7x 2-TC shard
            vmem_limit_bytes=vmem_limit,
        ),
    )(xp, wp)

    y2 = yp.reshape(batch + pad, dim)
    if pad:
        y2 = y2[:batch]
    return y2.reshape(orig_shape)


class CoreMat:
    """JAX/Pallas port of the PyTorch CoreMat module (weighted Hamming similarity)."""

    def __init__(self, dim):
        self.dim = dim
        # init_weights(): fill_(1.0), deterministic.
        self.weight = jnp.ones((1, dim), dtype=jnp.float32)

    def __call__(self, x):
        return coremat_forward(x, self.weight)

    def __repr__(self):
        return f"CoreMat(dim={self.dim})"


if __name__ == "__main__":
    key = jax.random.PRNGKey(0)
    k_x, k_x3, k_w, k_big, k_wb, k_rag, k_pad = jax.random.split(key, 7)

    batch, dim = 8, 32   # small shapes consistent with the module's (..., dim) input
    x = jax.random.normal(k_x, (batch, dim), dtype=jnp.float32)

    # 1) Module as specified (weight initialized to ones).
    mod = CoreMat(dim)
    y = jax.block_until_ready(mod(x))
    assert y.shape == (batch, dim)
    assert jnp.allclose(y, x * mod.weight, atol=1e-6), "mismatch (ones weight)"

    # 2) Non-trivial weight exercising the broadcast multiply.
    w_rand = jax.random.normal(k_w, (1, dim), dtype=jnp.float32)
    y2 = jax.block_until_ready(coremat_forward(x, w_rand))
    assert jnp.allclose(y2, x * w_rand, atol=1e-6), "mismatch (random weight)"

    # 3) Leading-dim broadcast path (x of shape (..., dim)).
    x3 = jax.random.normal(k_x3, (2, 4, dim), dtype=jnp.float32)
    y3 = jax.block_until_ready(coremat_forward(x3, w_rand))
    assert jnp.allclose(y3, x3 * w_rand, atol=1e-6), "mismatch (3-D input)"

    # 4) dim a multiple of 128 + multi-step grid (forced >=2 row blocks).
    xb = jax.random.normal(k_big, (48, 384), dtype=jnp.float32)
    wb = jax.random.normal(k_wb, (1, 384), dtype=jnp.float32)
    yb = jax.block_until_ready(coremat_forward(xb, wb))
    assert jnp.allclose(yb, xb * wb, atol=1e-6), "mismatch (128-multiple dim)"

    # 5) Ragged last row block handled by Pallas (no explicit padding).
    xr = jax.random.normal(k_rag, (50, 256), dtype=jnp.float32)
    wr = jnp.linspace(-1.0, 1.0, 256, dtype=jnp.float32).reshape(1, 256)
    yr = jax.block_until_ready(coremat_forward(xr, wr))
    assert jnp.allclose(yr, xr * wr, atol=1e-6), "mismatch (ragged rows)"

    # 6) Fallback pack path: dim % 128 != 0 and batch % g0 != 0 (tiny batch pad).
    xp_ = jax.random.normal(k_pad, (10, dim), dtype=jnp.float32)
    yp_ = jax.block_until_ready(coremat_forward(xp_, w_rand))
    assert jnp.allclose(yp_, xp_ * w_rand, atol=1e-6), "mismatch (padded pack)"

    # 7) PyTorch-style promotion: bf16 x with f32 weight -> f32 output.
    xbf = x.astype(jnp.bfloat16)
    ybf = jax.block_until_ready(coremat_forward(xbf, w_rand))
    assert ybf.dtype == jnp.float32
    assert jnp.allclose(ybf, xbf.astype(jnp.float32) * w_rand, atol=1e-6), "mismatch (bf16 promote)"

    print("KERNEL_OK")
</pallas_src>

<mosaic_0001>
module attributes {stable_mosaic.version = 11 : i64} {
  func.func @_coremat_kernel(%arg0: i32, %arg1: i32, %arg2: memref<1x256xf32, #tpu.memory_space<vmem>>, %arg3: memref<1x256xf32, #tpu.memory_space<vmem>>, %arg4: memref<1x256xf32, #tpu.memory_space<vmem>>) attributes {dimension_semantics = [#tpu.dimension_semantics<parallel>, #tpu.dimension_semantics<parallel>], iteration_bounds = array<i64: 1, 1>, scalar_prefetch = 0 : i64, scratch_operands = 0 : i64, tpu.core_type = #tpu.core_type<tc>, window_params = [{transform_indices = @transform_0, window_bounds = array<i64: 1, 256>}, {transform_indices = @transform_1, window_bounds = array<i64: 1, 256>}, {transform_indices = @transform_2, window_bounds = array<i64: 1, 256>}]} {
    %c0 = arith.constant 0 : index
    %c0_0 = arith.constant 0 : index
    %0 = vector.load %arg2[%c0, %c0_0] : memref<1x256xf32, #tpu.memory_space<vmem>>, vector<1x256xf32>
    %c0_1 = arith.constant 0 : index
    %c0_2 = arith.constant 0 : index
    %1 = vector.load %arg3[%c0_1, %c0_2] : memref<1x256xf32, #tpu.memory_space<vmem>>, vector<1x256xf32>
    %2 = arith.mulf %0, %1 : vector<1x256xf32>
    %c0_3 = arith.constant 0 : index
    %c0_4 = arith.constant 0 : index
    %3 = vector.load %arg4[%c0_3, %c0_4] : memref<1x256xf32, #tpu.memory_space<vmem>>, vector<1x256xf32>
    tpu.vector_store %arg4[%c0_3, %c0_4], %2 {strides = array<i32>} : memref<1x256xf32, #tpu.memory_space<vmem>>, vector<1x256xf32>,
    return
  }
  func.func @transform_0(%arg0: i32, %arg1: i32) -> (i32, i32) {
    %c0_i32 = arith.constant 0 : i32
    return %arg0, %arg1 : i32, i32
  }
  func.func @transform_1(%arg0: i32, %arg1: i32) -> (i32, i32) {
    %c0_i32 = arith.constant 0 : i32
    %c0_i32_0 = arith.constant 0 : i32
    return %c0_i32, %arg1 : i32, i32
  }
  func.func @transform_2(%arg0: i32, %arg1: i32) -> (i32, i32) {
    %c0_i32 = arith.constant 0 : i32
    return %arg0, %arg1 : i32, i32
  }
}

</mosaic_0001>

<llo_original>
// kernel: tpu_custom_call.1
$region0: #{tpu_custom_call.1}
  #allocation0 [shape = 'u32[]', space=smem, size = 0x4, offset = 0x4, fixed_abs, tag = 'smem constant byte address 0x4 - core index']
  #allocation1 [shape = 'u32[144,128]{1,0:T(1,128)}', space=vmem, size = 0x12000, scoped, tag = 'internal scratch']
  %s0 = inlined_call_operand.hbm [shape: f32[1,256], index: 0, kind: input, shape index: {}]
  %s1 = inlined_call_operand.vmem [shape: f32[1,256], index: 1, kind: input, shape index: {}]
  %s2 = inlined_call_operand.hbm [shape: f32[1,256], index: 2, kind: output, shape index: {}]
  %s3 = sld [smem:[#allocation0]]
  $region22: #{tpu_custom_call.1} parent=0
    _
  %s5 = ssub.s32 1, %s3
  %s6 = scalar_select 0, %s5, %s3
  $region1: #{tpu_custom_call.1} parent=0
    #allocation2 [shape = 'u8[1024]{0}', space=vmem, size = 0x400, scoped, tag = 'input window, operand 0, single buffered']
    #allocation3 [shape = 's32[1]{0}', space=sflag, size = 0x4, scoped, tag = 'scoped memory for tpu_custom_call.1']
    #allocation4 [shape = 's32[1]{0}', space=sflag, size = 0x4, scoped, tag = 'scoped memory for tpu_custom_call.1']
    #allocation5 [shape = 'u8[1024]{0}', space=vmem, size = 0x400, scoped, tag = 'output window, operand 0, single buffered']
    %7 = vsyncpa [#allocation3], 0
    %8 = vsyncpa [#allocation4], 0
    // Predicated region
    $region2: #{tpu_custom_call.1} parent=1 // pred_check
      _
    $region3: #{tpu_custom_call.1} parent=1 // pred_check_branch
      %10 = sbr.rel (0) target = $region5
    $region4: #{tpu_custom_call.1} parent=1 // pred_region
      %s12 = ssub.s32 32, 32
      %13 = vsyncadd [#allocation3], %s12
      %s15 = sshll.u32 [#allocation2], 4
      %s16 = int_to_ptr.vmem [resolvable:$true] %s15
      %18 = dma.hbm_to_vmem [thread:$0]  %s0, 32, %s16, [#allocation3]
    $region5: #{tpu_custom_call.1} parent=1 // pred_fallthru
      _
    // Predicated region
    $region6: #{tpu_custom_call.1} parent=1 // pred_check
      _
    $region7: #{tpu_custom_call.1} parent=1 // pred_check_branch
      %20 = sbr.rel (0) target = $region9
    $region8: #{tpu_custom_call.1} parent=1 // pred_region
      _
    $region9: #{tpu_custom_call.1} parent=1 // pred_fallthru
      _
    // Predicated region
    $region10: #{tpu_custom_call.1} parent=1 // pred_check
      _
    $region11: #{tpu_custom_call.1} parent=1 // pred_check_branch
      %22 = sbr.rel (0) target = $region13
    $region12: #{tpu_custom_call.1} parent=1 // pred_region
      %23 = dma.done [#allocation3], 32
    $region13: #{tpu_custom_call.1} parent=1 // pred_fallthru
      _
    %v24 = vld [vmem:[#allocation2] sm:$0x3]
    %v25 = vld [vmem:[%s1] sm:$0x3]
    %v26 = vmul.f32 %v24, %v25
    %v27 = vlaneseq
    %vm28 = vcmp.ge.s32.totalorder %v27, 0
    %vm29 = vcmp.lt.s32.totalorder %v27, 256
    %vm30 = vmand %vm28, %vm29
    %31 = vst.msk [vmem:[#allocation5] sm:$0x3] %vm30, %v26
    // Predicated region
    $region14: #{tpu_custom_call.1} parent=1 // pred_check
      _
    $region15: #{tpu_custom_call.1} parent=1 // pred_check_branch
      %33 = sbr.rel (0) target = $region17
    $region16: #{tpu_custom_call.1} parent=1 // pred_region
      %s35 = ssub.s32 32, 32
      %36 = vsyncadd [#allocation4], %s35
      %s38 = sshll.u32 [#allocation5], 4
      %s39 = int_to_ptr.vmem [resolvable:$true] %s38
      %41 = dma.vmem_to_hbm [thread:$0]  %s39, 32, %s2, [#allocation4]
    $region17: #{tpu_custom_call.1} parent=1 // pred_fallthru
      _
    // Predicated region
    $region18: #{tpu_custom_call.1} parent=1 // pred_check
      _
    $region19: #{tpu_custom_call.1} parent=1 // pred_check_branch
      %43 = sbr.rel (0) target = $region21
    $region20: #{tpu_custom_call.1} parent=1 // pred_region
      %44 = dma.done [#allocation4], 32
    $region21: #{tpu_custom_call.1} parent=1 // pred_fallthru
      _
    %45 = vsyncpa [#allocation3], 1
    %46 = vsyncpa [#allocation4], 1

</llo_original>
